<compile_context>
chip_gen: v5e
topology: v5e:2x2
jax: 0.10.0
libtpu: 0.0.40
codegen_flags: <defaults>
</compile_context>

<pallas_src>
import functools

import jax
import jax.numpy as jnp
from jax.experimental import pallas as pl
from jax.experimental.pallas import tpu as pltpu


def _infonce_tile_kernel(t2v_ref, v2t_ref, out_ref, *,
                         inv_t2v, inv_v2t, n_rows, b, b_is_pow2):
    """Partial sum of CE(t2v * inv_t2v) + CE(v2t * inv_v2t) over one row tile.

    t2v_ref, v2t_ref : (TM, C) similarity logits tile (f32 / bf16 / f16) in VMEM
    out_ref          : (1, 8, 128) f32 partial-sum block (scalar broadcast, lane-dense)
    """
    i = pl.program_id(0)
    tm, n_cols = t2v_ref.shape
    row0 = i * tm

    # Global row ids of this tile and the per-row target column (row % b),
    # computed in-register -- no target stream from HBM.
    local = jax.lax.broadcasted_iota(jnp.int32, (tm, 1), 0)
    grow = row0 + local                                        # (TM, 1) global rows
    if b_is_pow2:
        tgt = jnp.bitwise_and(grow, b - 1)
    else:
        # Exact integer mod via float quotient (+/-1 correction), using only
        # plain VPU ops; valid for n_rows well below 2**23 (always true here).
        gf = grow.astype(jnp.float32)
        q = jnp.floor(gf * (1.0 / float(b))).astype(jnp.int32)
        r = grow - q * b
        r = jnp.where(r < 0, r + b, r)
        tgt = jnp.where(r >= b, r - b, r)

    cols = jax.lax.broadcasted_iota(jnp.int32, (tm, n_cols), 1)
    target_mask = cols == tgt                                  # (TM, C) bool
    row_valid = grow < n_rows                                  # padded last-tile rows

    def tile_ce_sum(logits_ref, inv_temp):
        z = logits_ref[...].astype(jnp.float32) * inv_temp     # widen + 1/temperature
        # Pass 1 over z: row max and target-logit extraction (independent ->
        # the compiler can fuse them into a single traversal).
        m = jnp.max(z, axis=-1, keepdims=True)
        correct = jnp.sum(jnp.where(target_mask, z, 0.0), axis=-1, keepdims=True)
        # Pass 2 over z: numerically stable exp-sum.
        s = jnp.sum(jnp.exp(z - m), axis=-1, keepdims=True)
        lse = m + jnp.log(s)
        per_row = jnp.where(row_valid, lse - correct, 0.0)     # (TM, 1)
        return jnp.sum(per_row)

    partial = tile_ce_sum(t2v_ref, inv_t2v) + tile_ce_sum(v2t_ref, inv_v2t)
    # Lane-dense partial-sum block; wrapper reads element [i, 0, 0].
    out_ref[...] = jnp.full(out_ref.shape, partial, dtype=out_ref.dtype)


def _vmem_budget_and_limit():
    """Generation-aware logits budget + scoped VMEM limit."""
    cap = None
    try:
        cap = int(pltpu.get_tpu_info().vmem_capacity_bytes)
    except Exception:
        cap = None
    if not cap or cap <= 0:
        cap = 64 * 1024 * 1024          # conservative (v7x-sized) fallback
    budget = cap // 4                   # per-step logits + temporaries budget
    limit = min(cap // 2, 96 * 1024 * 1024)
    return budget, limit


def _choose_tile_rows(n_rows, n_cols, dtype, budget_bytes, *, min_tiles=4, max_rows=4096):
    """Largest sublane-aligned row tile that fits the budget AND keeps >= min_tiles steps."""
    itemsize = jnp.dtype(dtype).itemsize
    sub = 8 if itemsize >= 4 else (16 if itemsize == 2 else 32)
    if n_rows <= sub:
        return int(n_rows)              # tiny problem: one full-extent block
    cols_pad = -(-n_cols // 128) * 128
    # Per tile row: 2 logits streams x 2 pipeline buffers of the narrow input
    # plus ~2 lane-padded f32 temporaries (widened z, exp(z-m)) for the stream
    # currently being reduced.
    bytes_per_row = 2 * 2 * cols_pad * itemsize + 2 * cols_pad * 4
    tm_budget = max((budget_bytes // bytes_per_row) // sub * sub, sub)
    # Never emit a single-step grid: >= min_tiles steps keeps the DMA/compute
    # pipeline overlapped and lets megacore split the "parallel" row axis.
    tm_split = max(((-(-n_rows // min_tiles)) // sub) * sub, sub)
    return int(min(tm_budget, tm_split, max_rows))


def infonce_loss(t2v_sims, v2t_sims, t2v_temperature, v2t_temperature, *,
                 tile_rows=None, buffer_count=None):
    """JAX/Pallas equivalent of InfoNCELoss.forward."""
    t2v_sims = jnp.asarray(t2v_sims)
    v2t_sims = jnp.asarray(v2t_sims)
    if t2v_sims.dtype not in (jnp.float32, jnp.bfloat16, jnp.float16):
        t2v_sims = t2v_sims.astype(jnp.float32)
    if v2t_sims.dtype not in (jnp.float32, jnp.bfloat16, jnp.float16):
        v2t_sims = v2t_sims.astype(jnp.float32)
    if v2t_sims.dtype != t2v_sims.dtype:
        common = jnp.promote_types(t2v_sims.dtype, v2t_sims.dtype)
        t2v_sims = t2v_sims.astype(common)
        v2t_sims = v2t_sims.astype(common)

    b = t2v_sims.shape[-2]              # target modulus (torch: arange(b))
    n_cols = t2v_sims.shape[-1]
    if t2v_sims.ndim == 2:
        n_rows = t2v_sims.shape[0]
    elif t2v_sims.ndim == 3:
        m = t2v_sims.shape[0]
        n_rows = m * b
        t2v_sims = t2v_sims.reshape(n_rows, n_cols)
        v2t_sims = v2t_sims.reshape(n_rows, n_cols)
    else:
        raise ValueError("t2v_sims must be 2D or 3D")

    itemsize = jnp.dtype(t2v_sims.dtype).itemsize
    budget_bytes, vmem_limit_bytes = _vmem_budget_and_limit()
    tm = tile_rows if tile_rows is not None else _choose_tile_rows(
        n_rows, n_cols, t2v_sims.dtype, budget_bytes)
    if tm != n_rows and tm % 8 != 0:
        raise ValueError("tile_rows must be a multiple of 8 or equal to the row count")
    num_tiles = -(-n_rows // tm)

    kernel = functools.partial(
        _infonce_tile_kernel,
        inv_t2v=float(1.0 / t2v_temperature),
        inv_v2t=float(1.0 / v2t_temperature),
        n_rows=n_rows,
        b=int(b),
        b_is_pow2=bool(b > 0 and (b & (b - 1)) == 0),
    )

    cols_pad = -(-n_cols // 128) * 128
    cost = pl.CostEstimate(
        flops=int(12 * n_rows * cols_pad),
        transcendentals=int(2 * n_rows * cols_pad + 4 * n_rows),
        bytes_accessed=int(2 * n_rows * n_cols * itemsize + num_tiles * 8 * 128 * 4),
    )

    # Optional extra pipeline depth for many-small-step cases (sweepable;
    # default path identical to the validated 2-buffer pipeline).
    spec_kwargs = {}
    if buffer_count is not None and int(buffer_count) != 2:
        spec_kwargs = dict(pipeline_mode=pl.Buffered(int(buffer_count)))
    in_specs = [
        pl.BlockSpec((tm, n_cols), lambda i: (i, 0), **spec_kwargs),  # t2v logits tile
        pl.BlockSpec((tm, n_cols), lambda i: (i, 0), **spec_kwargs),  # v2t logits tile
    ]

    partials = pl.pallas_call(
        kernel,
        out_shape=jax.ShapeDtypeStruct((num_tiles, 8, 128), jnp.float32),
        grid_spec=pltpu.PrefetchScalarGridSpec(
            num_scalar_prefetch=0,
            grid=(num_tiles,),
            in_specs=in_specs,
            out_specs=pl.BlockSpec((1, 8, 128), lambda i: (i, 0, 0)),
        ),
        compiler_params=pltpu.CompilerParams(
            dimension_semantics=("parallel",),     # independent per-tile partials
            vmem_limit_bytes=int(vmem_limit_bytes),
        ),
        cost_estimate=cost,
    )(t2v_sims, v2t_sims)

    # Tiny wrapper-side reduction over num_tiles partial sums; divide by true N.
    return jnp.sum(partials[:, 0, 0]) / n_rows


def _reference_loss(t2v_sims, v2t_sims, t2v_temp, v2t_temp):
    """Pure-JAX reference mirroring torch.nn.CrossEntropyLoss(reduction='mean')."""
    t2v = jnp.asarray(t2v_sims, jnp.float32)
    v2t = jnp.asarray(v2t_sims, jnp.float32)
    b = t2v.shape[-2]
    if t2v.ndim == 3:
        m = t2v.shape[0]
        t2v = t2v.reshape(m * b, b)
        v2t = v2t.reshape(m * b, b)
    target = jnp.arange(t2v.shape[0]) % b

    def ce(logits):
        logp = jax.nn.log_softmax(logits, axis=-1)
        return -jnp.mean(logp[jnp.arange(logits.shape[0]), target])

    return ce(t2v / t2v_temp) + ce(v2t / v2t_temp)


if __name__ == "__main__":
    key = jax.random.PRNGKey(0)
    k1, k2, k3, k4 = jax.random.split(key, 4)

    t2v_temperature, v2t_temperature = 0.07, 0.05

    # Case 1: 3D stacked similarity matrices (m, b, b), f32.  The auto tile
    # chooser now splits this into multiple pipelined row tiles.
    m, b = 2, 8
    t2v = jax.random.normal(k1, (m, b, b), dtype=jnp.float32)
    v2t = jax.random.normal(k2, (m, b, b), dtype=jnp.float32)
    loss = jax.block_until_ready(infonce_loss(t2v, v2t, t2v_temperature, v2t_temperature))
    ref = _reference_loss(t2v, v2t, t2v_temperature, v2t_temperature)
    assert jnp.allclose(loss, ref, rtol=1e-5, atol=1e-5), (loss, ref)

    # Case 2: forced multi-tile grid with a partial last tile (exercises row-padding
    # mask + parallel partial-sum reduction): N = 3*8 = 24 rows, tile_rows = 16.
    m2, b2 = 3, 8
    t2v2 = jax.random.normal(k3, (m2, b2, b2), dtype=jnp.float32)
    v2t2 = jax.random.normal(k4, (m2, b2, b2), dtype=jnp.float32)
    loss2 = jax.block_until_ready(infonce_loss(t2v2, v2t2, 0.1, 0.2, tile_rows=16))
    ref2 = _reference_loss(t2v2, v2t2, 0.1, 0.2)
    assert jnp.allclose(loss2, ref2, rtol=1e-5, atol=1e-5), (loss2, ref2)

    # Case 3: bf16 logits stay bf16 in HBM and are widened to f32 in-register.
    t2v_bf = t2v.astype(jnp.bfloat16)
    v2t_bf = v2t.astype(jnp.bfloat16)
    loss3 = jax.block_until_ready(
        infonce_loss(t2v_bf, v2t_bf, t2v_temperature, v2t_temperature))
    ref3 = _reference_loss(t2v_bf.astype(jnp.float32), v2t_bf.astype(jnp.float32),
                           t2v_temperature, v2t_temperature)
    assert jnp.allclose(loss3, ref3, rtol=1e-4, atol=1e-4), (loss3, ref3)

    print("KERNEL_OK")
</pallas_src>

<mosaic_0001>
module attributes {stable_mosaic.version = 11 : i64} {
  func.func @_infonce_tile_kernel(%arg0: i32, %arg1: memref<8x8xf32, #tpu.memory_space<vmem>>, %arg2: memref<8x8xf32, #tpu.memory_space<vmem>>, %arg3: memref<1x8x128xf32, #tpu.memory_space<vmem>>) attributes {dimension_semantics = [#tpu.dimension_semantics<parallel>], iteration_bounds = array<i64: 2>, scalar_prefetch = 0 : i64, scratch_operands = 0 : i64, tpu.core_type = #tpu.core_type<tc>, window_params = [{transform_indices = @transform_0, window_bounds = array<i64: 8, 8>}, {transform_indices = @transform_1, window_bounds = array<i64: 8, 8>}, {transform_indices = @transform_2, window_bounds = array<i64: 1, 8, 128>}]} {
    %c8_i32 = arith.constant 8 : i32
    %0 = arith.muli %arg0, %c8_i32 : i32
    %1 = tpu.iota {dimensions = array<i32: 0>} : vector<8x1xi32>
    %2 = vector.broadcast %0 : i32 to vector<8x1xi32>
    %3 = arith.addi %2, %1 : vector<8x1xi32>
    %c7_i32 = arith.constant 7 : i32
    %4 = vector.broadcast %c7_i32 : i32 to vector<8x1xi32>
    %5 = arith.andi %3, %4 : vector<8x1xi32>
    %6 = tpu.iota {dimensions = array<i32: 1>} : vector<8x8xi32>
    %7 = vector.broadcast %5 : vector<8x1xi32> to vector<8x8xi32>
    %8 = arith.cmpi eq, %6, %7 : vector<8x8xi32>
    %c16_i32 = arith.constant 16 : i32
    %9 = vector.broadcast %c16_i32 : i32 to vector<8x1xi32>
    %10 = arith.cmpi slt, %3, %9 : vector<8x1xi32>
    %c0 = arith.constant 0 : index
    %c0_0 = arith.constant 0 : index
    %11 = vector.load %arg1[%c0, %c0_0] : memref<8x8xf32, #tpu.memory_space<vmem>>, vector<8x8xf32>
    %cst = arith.constant 14.2857141 : f32
    %12 = vector.broadcast %cst : f32 to vector<8x8xf32>
    %13 = arith.mulf %11, %12 : vector<8x8xf32>
    %cst_1 = arith.constant dense<0xFF800000> : vector<8xf32>
    %14 = vector.multi_reduction <maximumf>, %13, %cst_1 [1] : vector<8x8xf32> to vector<8xf32>
    %15 = vector.shape_cast %14 : vector<8xf32> to vector<8x1xf32>
    %cst_2 = arith.constant 0.000000e+00 : f32
    %16 = vector.broadcast %cst_2 : f32 to vector<8x8xf32>
    %17 = arith.select %8, %13, %16 : vector<8x8xi1>, vector<8x8xf32>
    %cst_3 = arith.constant dense<0.000000e+00> : vector<8xf32>
    %18 = vector.multi_reduction <add>, %17, %cst_3 [1] : vector<8x8xf32> to vector<8xf32>
    %19 = vector.shape_cast %18 : vector<8xf32> to vector<8x1xf32>
    %20 = vector.broadcast %15 : vector<8x1xf32> to vector<8x8xf32>
    %21 = arith.subf %13, %20 : vector<8x8xf32>
    %22 = math.exp %21 : vector<8x8xf32>
    %cst_4 = arith.constant dense<0.000000e+00> : vector<8xf32>
    %23 = vector.multi_reduction <add>, %22, %cst_4 [1] : vector<8x8xf32> to vector<8xf32>
    %24 = vector.shape_cast %23 : vector<8xf32> to vector<8x1xf32>
    %25 = math.log %24 : vector<8x1xf32>
    %26 = arith.addf %15, %25 : vector<8x1xf32>
    %27 = arith.subf %26, %19 : vector<8x1xf32>
    %cst_5 = arith.constant 0.000000e+00 : f32
    %28 = vector.broadcast %cst_5 : f32 to vector<8x1xf32>
    %29 = arith.select %10, %27, %28 : vector<8x1xi1>, vector<8x1xf32>
    %30 = vector.shape_cast %29 : vector<8x1xf32> to vector<1x8x1xf32>
    %cst_6 = arith.constant dense<0.000000e+00> : vector<1xf32>
    %31 = vector.multi_reduction <add>, %30, %cst_6 [1, 2] : vector<1x8x1xf32> to vector<1xf32>
    %32 = vector.shape_cast %31 : vector<1xf32> to vector<1x1x1xf32>
    %33 = vector.extract %32[0, 0, 0] : f32 from vector<1x1x1xf32>
    %c0_7 = arith.constant 0 : index
    %c0_8 = arith.constant 0 : index
    %34 = vector.load %arg2[%c0_7, %c0_8] : memref<8x8xf32, #tpu.memory_space<vmem>>, vector<8x8xf32>
    %cst_9 = arith.constant 2.000000e+01 : f32
    %35 = vector.broadcast %cst_9 : f32 to vector<8x8xf32>
    %36 = arith.mulf %34, %35 : vector<8x8xf32>
    %cst_10 = arith.constant dense<0xFF800000> : vector<8xf32>
    %37 = vector.multi_reduction <maximumf>, %36, %cst_10 [1] : vector<8x8xf32> to vector<8xf32>
    %38 = vector.shape_cast %37 : vector<8xf32> to vector<8x1xf32>
    %cst_11 = arith.constant 0.000000e+00 : f32
    %39 = vector.broadcast %cst_11 : f32 to vector<8x8xf32>
    %40 = arith.select %8, %36, %39 : vector<8x8xi1>, vector<8x8xf32>
    %cst_12 = arith.constant dense<0.000000e+00> : vector<8xf32>
    %41 = vector.multi_reduction <add>, %40, %cst_12 [1] : vector<8x8xf32> to vector<8xf32>
    %42 = vector.shape_cast %41 : vector<8xf32> to vector<8x1xf32>
    %43 = vector.broadcast %38 : vector<8x1xf32> to vector<8x8xf32>
    %44 = arith.subf %36, %43 : vector<8x8xf32>
    %45 = math.exp %44 : vector<8x8xf32>
    %cst_13 = arith.constant dense<0.000000e+00> : vector<8xf32>
    %46 = vector.multi_reduction <add>, %45, %cst_13 [1] : vector<8x8xf32> to vector<8xf32>
    %47 = vector.shape_cast %46 : vector<8xf32> to vector<8x1xf32>
    %48 = math.log %47 : vector<8x1xf32>
    %49 = arith.addf %38, %48 : vector<8x1xf32>
    %50 = arith.subf %49, %42 : vector<8x1xf32>
    %cst_14 = arith.constant 0.000000e+00 : f32
    %51 = vector.broadcast %cst_14 : f32 to vector<8x1xf32>
    %52 = arith.select %10, %50, %51 : vector<8x1xi1>, vector<8x1xf32>
    %53 = vector.shape_cast %52 : vector<8x1xf32> to vector<1x8x1xf32>
    %cst_15 = arith.constant dense<0.000000e+00> : vector<1xf32>
    %54 = vector.multi_reduction <add>, %53, %cst_15 [1, 2] : vector<1x8x1xf32> to vector<1xf32>
    %55 = vector.shape_cast %54 : vector<1xf32> to vector<1x1x1xf32>
    %56 = vector.extract %55[0, 0, 0] : f32 from vector<1x1x1xf32>
    %57 = arith.addf %33, %56 : f32
    %58 = vector.broadcast %57 : f32 to vector<1x8x128xf32>
    %c0_16 = arith.constant 0 : index
    %c0_17 = arith.constant 0 : index
    %c0_18 = arith.constant 0 : index
    %59 = vector.load %arg3[%c0_16, %c0_17, %c0_18] : memref<1x8x128xf32, #tpu.memory_space<vmem>>, vector<1x8x128xf32>
    tpu.vector_store %arg3[%c0_16, %c0_17, %c0_18], %58 {strides = array<i32>} : memref<1x8x128xf32, #tpu.memory_space<vmem>>, vector<1x8x128xf32>,
    return
  }
  func.func @transform_0(%arg0: i32) -> (i32, i32) {
    %c0_i32 = arith.constant 0 : i32
    %c0_i32_0 = arith.constant 0 : i32
    return %arg0, %c0_i32 : i32, i32
  }
  func.func @transform_1(%arg0: i32) -> (i32, i32) {
    %c0_i32 = arith.constant 0 : i32
    %c0_i32_0 = arith.constant 0 : i32
    return %arg0, %c0_i32 : i32, i32
  }
  func.func @transform_2(%arg0: i32) -> (i32, i32, i32) {
    %c0_i32 = arith.constant 0 : i32
    %c0_i32_0 = arith.constant 0 : i32
    %c0_i32_1 = arith.constant 0 : i32
    return %arg0, %c0_i32, %c0_i32_0 : i32, i32, i32
  }
}

</mosaic_0001>

<llo_original>
// kernel: tpu_custom_call.1
$region0: #{tpu_custom_call.1}
  #allocation0 [shape = 'u32[]', space=smem, size = 0x4, offset = 0x4, fixed_abs, tag = 'smem constant byte address 0x4 - core index']
  #allocation1 [shape = 'u32[72,128]{1,0:T(1,128)}', space=vmem, size = 0x9000, scoped, tag = 'internal scratch']
  %s0 = inlined_call_operand.vmem [shape: f32[16,8], index: 0, kind: input, shape index: {}]
  %s1 = inlined_call_operand.vmem [shape: f32[16,8], index: 1, kind: input, shape index: {}]
  %s2 = inlined_call_operand.hbm [shape: f32[2,8,128], index: 2, kind: output, shape index: {}]
  %s3 = sld [smem:[#allocation0]]
  $region41: #{tpu_custom_call.1} parent=0
    _
  %s5 = ssub.s32 1, %s3
  %s6 = scalar_select 0, %s5, %s3
  $region1: #{tpu_custom_call.1} parent=0
    #allocation2 [shape = 'u8[8192]{0}', space=vmem, size = 0x2000, scoped, tag = 'output window, operand 0']
    #allocation3 [shape = 's32[2]{0}', space=sflag, size = 0x8, scoped, tag = 'scoped memory for tpu_custom_call.1']
    %7 = vsyncpa [#allocation3], 0
    %s8 = scalar_lea.sflag [#allocation3], 1
    %9 = vsyncpa %s8, 0
    loop: start=0, step=1, limit=4
    $region2: #{tpu_custom_call.1} parent=1 // loop_pre_header
      _
    $region3: #{tpu_custom_call.1} parent=1 // loop_header
      %s11 = sphi 0, %s15
      %p12 = scmp.ge.s32.totalorder %s11, 4
      %s21 = sphi 0, %s23
      %s24 = sphi 0, %s21
      %s25 = sphi 0, %s24
      %s41 = sphi 0, %s25
      %s47 = sphi 0, %s49
      %s50 = sphi 0, %s47
      %s51 = sphi 0, %s50
      %s67 = sphi 0, %s51
      %s73 = sphi 0, %s75
      %s76 = sphi 0, %s73
      %s77 = sphi 0, %s76
      %s93 = sphi 0, %s77
    $region4: #{tpu_custom_call.1} parent=1 // loop_header_branch
      %14 = sbr.rel (%p12) target = $region8
    $region5: #{tpu_custom_call.1} parent=1 // loop_body
      %s16 = ssub.s32 %s11, 1
      %s17 = ssub.s32 %s11, 2
      %s18 = sadd.s32 %s11, 1
      %s19 = ssub.s32 %s11, %s18
      %p20 = scmp.eq.s32.totalorder %s19, 0
      %s22 = sadd.s32 %s21, 1
      %s23 = scalar_select %p20, %s21, %s22
      %p26 = pneg %p20
      %p27 = scmp.eq.s32.totalorder %s11, 1
      %p28 = por %p26, %p27
      %p29 = scmp.ne.s32.totalorder %s21, %s24
      %p30 = scmp.eq.s32.totalorder %s11, 0
      %p31 = por %p29, %p30
      %p32 = scmp.ne.s32.totalorder %s21, %s24
      %p33 = scmp.eq.s32.totalorder %s16, 1
      %p34 = por %p32, %p33
      %p35 = scmp.ne.s32.totalorder %s24, %s25
      %p36 = scmp.eq.s32.totalorder %s16, 0
      %p37 = por %p35, %p36
      %p38 = scmp.ne.s32.totalorder %s24, %s25
      %p39 = scmp.eq.s32.totalorder %s17, 1
      %p40 = por %p38, %p39
      %p42 = scmp.ne.s32.totalorder %s25, %s41
      %p43 = scmp.eq.s32.totalorder %s17, 0
      %p44 = por %p42, %p43
      %s45 = ssub.s32 %s11, %s18
      %p46 = scmp.eq.s32.totalorder %s45, 0
      %s48 = sadd.s32 %s47, 1
      %s49 = scalar_select %p46, %s47, %s48
      %p52 = pneg %p46
      %p53 = scmp.eq.s32.totalorder %s11, 1
      %p54 = por %p52, %p53
      %p55 = scmp.ne.s32.totalorder %s47, %s50
      %p56 = scmp.eq.s32.totalorder %s11, 0
      %p57 = por %p55, %p56
      %p58 = scmp.ne.s32.totalorder %s47, %s50
      %p59 = scmp.eq.s32.totalorder %s16, 1
      %p60 = por %p58, %p59
      %p61 = scmp.ne.s32.totalorder %s50, %s51
      %p62 = scmp.eq.s32.totalorder %s16, 0
      %p63 = por %p61, %p62
      %p64 = scmp.ne.s32.totalorder %s50, %s51
      %p65 = scmp.eq.s32.totalorder %s17, 1
      %p66 = por %p64, %p65
      %p68 = scmp.ne.s32.totalorder %s51, %s67
      %p69 = scmp.eq.s32.totalorder %s17, 0
      %p70 = por %p68, %p69
      %s71 = ssub.s32 %s11, %s18
      %p72 = scmp.eq.s32.totalorder %s71, 0
      %s74 = sadd.s32 %s73, 1
      %s75 = scalar_select %p72, %s73, %s74
      %p78 = pneg %p72
      %p79 = scmp.eq.s32.totalorder %s11, 1
      %p80 = por %p78, %p79
      %p81 = scmp.ne.s32.totalorder %s73, %s76
      %p82 = scmp.eq.s32.totalorder %s11, 0
      %p83 = por %p81, %p82
      %p84 = scmp.ne.s32.totalorder %s73, %s76
      %p85 = scmp.eq.s32.totalorder %s16, 1
      %p86 = por %p84, %p85
      %p87 = scmp.ne.s32.totalorder %s76, %s77
      %p88 = scmp.eq.s32.totalorder %s16, 0
      %p89 = por %p87, %p88
      %p90 = scmp.ne.s32.totalorder %s76, %s77
      %p91 = scmp.eq.s32.totalorder %s17, 1
      %p92 = por %p90, %p91
      %p94 = scmp.ne.s32.totalorder %s77, %s93
      %p95 = scmp.eq.s32.totalorder %s17, 0
      %p96 = por %p94, %p95
      %p97 = scmp.le.s32.totalorder 1, %s11
      %p98 = scmp.lt.s32.totalorder %s11, 3
      %p99 = pnand %p97, %p98
      %p100 = pneg %p99
      // Predicated region
      $region9: #{tpu_custom_call.1} parent=5 // pred_check
        _
      $region10: #{tpu_custom_call.1} parent=5 // pred_check_branch
        %102 = sbr.rel (%p99) target = $region12
      $region11: #{tpu_custom_call.1} parent=5 // pred_region
        %s103 = ssub.s32 %s11, 1
      $region12: #{tpu_custom_call.1} parent=5 // pred_fallthru
        _
      %p104 = scmp.lt.s32.totalorder %s11, 2
      // Predicated region
      $region13: #{tpu_custom_call.1} parent=5 // pred_check
        %p105 = pneg %p104
      $region14: #{tpu_custom_call.1} parent=5 // pred_check_branch
        %107 = sbr.rel (%p105) target = $region16
      $region15: #{tpu_custom_call.1} parent=5 // pred_region
        // Predicated region
        $region17: #{tpu_custom_call.1} parent=15 // pred_check
          %p108 = pneg %p31
        $region18: #{tpu_custom_call.1} parent=15 // pred_check_branch
          %110 = sbr.rel (%p108) target = $region20
        $region19: #{tpu_custom_call.1} parent=15 // pred_region
          %p111 = scmp.lt.s32.totalorder %s11, 1
          %s112 = scalar_select %p111, %s11, 1
          %s113 = smul.addr %s112, 8
          %s114 = scalar_lea.vmem %s0, %s113
        $region20: #{tpu_custom_call.1} parent=15 // pred_fallthru
          _
        // Predicated region
        $region21: #{tpu_custom_call.1} parent=15 // pred_check
          %p115 = pneg %p57
        $region22: #{tpu_custom_call.1} parent=15 // pred_check_branch
          %117 = sbr.rel (%p115) target = $region24
        $region23: #{tpu_custom_call.1} parent=15 // pred_region
          %p118 = scmp.lt.s32.totalorder %s11, 1
          %s119 = scalar_select %p118, %s11, 1
          %s120 = smul.addr %s119, 8
          %s121 = scalar_lea.vmem %s1, %s120
        $region24: #{tpu_custom_call.1} parent=15 // pred_fallthru
          _
      $region16: #{tpu_custom_call.1} parent=5 // pred_fallthru
        _
      %p122 = scmp.le.s32.totalorder 1, %s11
      %p123 = scmp.lt.s32.totalorder %s11, 3
      %p124 = pnand %p122, %p123
      %p125 = pneg %p124
      // Predicated region
      $region25: #{tpu_custom_call.1} parent=5 // pred_check
        _
      $region26: #{tpu_custom_call.1} parent=5 // pred_check_branch
        %127 = sbr.rel (%p124) target = $region28
      $region27: #{tpu_custom_call.1} parent=5 // pred_region
        %s128 = ssub.s32 %s11, 1
        %p129 = scmp.lt.s32.totalorder %s16, 1
        %s130 = scalar_select %p129, %s16, 1
        %s131 = smul.addr %s130, 8
        %s132 = scalar_lea.vmem %s0, %s131
        %p133 = pneg %p37
        %p134 = pneg %p34
        %p135 = scmp.lt.s32.totalorder %s16, 1
        %s136 = scalar_select %p135, %s16, 1
        %s137 = smul.addr %s136, 8
        %s138 = scalar_lea.vmem %s1, %s137
        %p139 = pneg %p63
        %p140 = pneg %p60
        %p141 = pneg %p89
        %p142 = pneg %p86
        %s143 = sand.u32 %s76, 1
        %s144 = scalar_lea.sflag [#allocation3], %s143
        %s145 = sand.u32 %s76, 1
        %s146 = smul.addr %s145, 8
        %s147 = scalar_lea.vmem [#allocation2], %s146
        %p148 = scmp.lt.s32.totalorder %s16, 1
        %s149 = scalar_select %p148, %s16, 1
        %s150 = smul.addr %s149, 8
        %s151 = scalar_lea.vmem %s0, %s150
        %p152 = scmp.lt.s32.totalorder %s16, 1
        %s153 = scalar_select %p152, %s16, 1
        %s154 = smul.addr %s153, 8
        %s155 = scalar_lea.vmem %s1, %s154
        %s156 = smul.u32 %s16, 8
        %v157 = vlaneseq
        %v158 = vshrl.u32 %v157, 7
        %v159 = vstv %s156
        %v160 = vadd.s32 %v159, %v158
        %v161 = vand.u32 %v160, 7
        %v162 = vlaneseq
        %v163 = vand.u32 %v162, 127
        %vm164 = vcmp.eq.s32.totalorder %v163, %v161
        %vm165 = vcmp.lt.s32.totalorder %v160, 16
        %v166 = vld [vmem:[%s151] sm:$0xff]
        %v167 = vmul.f32 %v166, 14.285714
        %vm168 = vcmask 64512
        %v169 = vsel %vm168, %v167, -inf
        %170 = vmax.xlane.f32.xlu0 %v169
        %v171 = vpop.xlane.xlu0 %170
        %v172 = vsel %vm164, %v167, 0.0
        %v173 = vsel %vm168, %v172, 0.0
        %174 = vadd.xlane.f32.xlu0 %v173
        %v175 = vpop.xlane.xlu0 %174
        %v176 = vsub.f32 %v167, %v171
        %v177 = vmul.f32 %v176, 1.442695
        %v178 = vpow.pop %v177
        %v179 = vsel %vm168, %v178, 0.0
        %180 = vadd.xlane.f32.xlu0 %v179
        %v181 = vpop.xlane.xlu0 %180
        %v182 = vlog2.pop %v181
        %v183 = vmul.f32 %v182, 0.6931472
        %v184 = vadd.f32 %v171, %v183
        %v185 = vsub.f32 %v184, %v175
        %v186 = vsel %vm165, %v185, 0.0
        %vm187 = vcmask 7168
        %v188 = vsel %vm187, %v186, 0.0
        %189 = vadd.xlane.f32.xlu0 %v188
        %v190 = vpop.xlane.xlu0 %189
        %v191 = vrot.slane %v190, 4
        %v192 = vadd.f32 %v190, %v191
        %v193 = vrot.slane %v192, 2
        %v194 = vadd.f32 %v192, %v193
        %v195 = vrot.slane %v194, 1
        %v196 = vadd.f32 %v194, %v195
        %s197 = vtos %v196
        %v198 = vld [vmem:[%s155] sm:$0xff]
        %v199 = vmul.f32 %v198, 20.0
        %v200 = vsel %vm168, %v199, -inf
        %201 = vmax.xlane.f32.xlu0 %v200
        %v202 = vpop.xlane.xlu0 %201
        %v203 = vsel %vm164, %v199, 0.0
        %v204 = vsel %vm168, %v203, 0.0
        %205 = vadd.xlane.f32.xlu0 %v204
        %v206 = vpop.xlane.xlu0 %205
        %v207 = vsub.f32 %v199, %v202
        %v208 = vmul.f32 %v207, 1.442695
        %v209 = vpow.pop %v208
        %v210 = vsel %vm168, %v209, 0.0
        %211 = vadd.xlane.f32.xlu0 %v210
        %v212 = vpop.xlane.xlu0 %211
        %v213 = vlog2.pop %v212
        %v214 = vmul.f32 %v213, 0.6931472
        %v215 = vadd.f32 %v202, %v214
        %v216 = vsub.f32 %v215, %v206
        %v217 = vsel %vm165, %v216, 0.0
        %v218 = vsel %vm187, %v217, 0.0
        %219 = vadd.xlane.f32.xlu0 %v218
        %v220 = vpop.xlane.xlu0 %219
        %v221 = vrot.slane %v220, 4
        %v222 = vadd.f32 %v220, %v221
        %v223 = vrot.slane %v222, 2
        %v224 = vadd.f32 %v222, %v223
        %v225 = vrot.slane %v224, 1
        %v226 = vadd.f32 %v224, %v225
        %s227 = vtos %v226
        %s228 = sadd.f32 %s197, %s227
        %v229 = vstv %s228
        %230 = vst [vmem:[%s147] sm:$0xff] %v229
        %s231 = sand.u32 %s76, 1
        %s232 = scalar_lea.sflag [#allocation3], %s231
        %s233 = sand.u32 %s76, 1
        %s234 = smul.addr %s233, 8
        %s235 = scalar_lea.vmem [#allocation2], %s234
        // Predicated region
        $region29: #{tpu_custom_call.1} parent=27 // pred_check
          %p236 = pneg %p86
        $region30: #{tpu_custom_call.1} parent=27 // pred_check_branch
          %238 = sbr.rel (%p236) target = $region32
        $region31: #{tpu_custom_call.1} parent=27 // pred_region
          %240 = vsyncadd %s232, 0
          %s241 = smul.addr %s16, 8
          %s242 = scalar_lea.hbm %s2, %s241
          %s244 = sshll.u32 %s235, 4
          %s245 = int_to_ptr.vmem [resolvable:$true] %s244
          %s246 = sshll.u32 %s242, 4
          %s247 = int_to_ptr.hbm [resolvable:$true] %s246
          %249 = dma.vmem_to_hbm [thread:$0]  %s245, 128, %s247, %s232
        $region32: #{tpu_custom_call.1} parent=27 // pred_fallthru
          _
      $region28: #{tpu_custom_call.1} parent=5 // pred_fallthru
        _
      %p250 = scmp.le.s32.totalorder 2, %s11
      // Predicated region
      $region33: #{tpu_custom_call.1} parent=5 // pred_check
        %p251 = pneg %p250
      $region34: #{tpu_custom_call.1} parent=5 // pred_check_branch
        %253 = sbr.rel (%p251) target = $region36
      $region35: #{tpu_custom_call.1} parent=5 // pred_region
        %s254 = ssub.s32 %s11, 2
        // Predicated region
        $region37: #{tpu_custom_call.1} parent=35 // pred_check
          %p255 = pneg %p92
        $region38: #{tpu_custom_call.1} parent=35 // pred_check_branch
          %257 = sbr.rel (%p255) target = $region40
        $region39: #{tpu_custom_call.1} parent=35 // pred_region
          %s258 = sand.u32 %s77, 1
          %s259 = scalar_lea.sflag [#allocation3], %s258
          %s260 = sand.u32 %s77, 1
          %s261 = smul.addr %s260, 8
          %s262 = scalar_lea.vmem [#allocation2], %s261
          %264 = dma.done %s259, 128
        $region40: #{tpu_custom_call.1} parent=35 // pred_fallthru
          _
      $region36: #{tpu_custom_call.1} parent=5 // pred_fallthru
        _
    $region6: #{tpu_custom_call.1} parent=1 // loop_footer
      %s15 = sadd.s32 1, %s11
    $region7: #{tpu_custom_call.1} parent=1 // loop_footer_branch
      %10 = sbr.rel target = $region3
    $region8: #{tpu_custom_call.1} parent=1 // loop_exit
      _
    %265 = vsyncpa [#allocation3], 1
    %s266 = scalar_lea.sflag [#allocation3], 1
    %267 = vsyncpa %s266, 1

</llo_original>
